<compile_context>
chip_gen: v7x
topology: tpu7x:2x2x1
jax: 0.10.0
libtpu: 0.0.40
codegen_flags: <defaults>
</compile_context>

<pallas_src>
import functools
import math

import jax
import jax.numpy as jnp
from jax.experimental import pallas as pl
from jax.experimental.pallas import tpu as pltpu


# ----------------------------- Fused Pallas kernel -----------------------------

def _fused_attention_kernel(x_ref, wqkv_ref, wo_ref, cos_ref, sin_ref, o_ref, *,
                            n_heads, n_kv_heads, head_dim, matmul_dtype, approx_recip):
    repeats = n_heads // n_kv_heads
    H, Hkv, D = n_heads, n_kv_heads, head_dim
    Dh = D // 2
    # Contract dim 1 of both operands: y = a @ b^T for PyTorch (out, in) weights and
    # s = q @ k^T -- no explicit transposes feeding the MXU.
    dn = (((1,), (1,)), ((), ()))

    x = x_ref[...]                                            # (S, dim) f32
    S = x.shape[0]

    # --- Fused QKV projection: one lane-dense (S, dim) x (H*D + 2*Hkv*D, dim)^T. ---
    qkv = jax.lax.dot_general(x.astype(matmul_dtype),
                              wqkv_ref[...].astype(matmul_dtype), dn,
                              preferred_element_type=jnp.float32)   # (S, 128) f32
    q_off = 0
    k_off = H * D
    v_off = (H + Hkv) * D

    cos = cos_ref[...]                                        # (S, D//2) f32
    sin = sin_ref[...]                                        # (S, D//2) f32

    row = jax.lax.broadcasted_iota(jnp.int32, (S, S), 0)
    col = jax.lax.broadcasted_iota(jnp.int32, (S, S), 1)
    causal = row >= col
    neg = jnp.float32(-1e30)

    def rope_halves(t):
        # t: (S, D) in de-interleaved (half-split) feature order -> rotate-half RoPE,
        # reassembled lane-contiguously so the score matmul contracts over full D.
        t1 = t[:, :Dh]
        t2 = t[:, Dh:]
        return jnp.concatenate([t1 * cos - t2 * sin, t1 * sin + t2 * cos], axis=-1)

    # RoPE each query / KV head exactly ONCE in f32 (GQA: no repeat / duplication);
    # the 1/sqrt(D) scale is already folded into the wq weights at init.
    q_rot = [rope_halves(qkv[:, q_off + h * D: q_off + (h + 1) * D]).astype(matmul_dtype)
             for h in range(H)]
    k_rot = [rope_halves(qkv[:, k_off + g * D: k_off + (g + 1) * D]).astype(matmul_dtype)
             for g in range(Hkv)]
    v_heads = [qkv[:, v_off + g * D: v_off + (g + 1) * D].astype(matmul_dtype)
               for g in range(Hkv)]

    heads_out = []
    for h in range(H):              # static unroll -> no grid-step overhead (toy size)
        g = h // repeats            # shared KV head for this query head
        # Single full-D contraction per head (was two D/2 half contractions).
        s = jax.lax.dot_general(q_rot[h], k_rot[g], dn,
                                preferred_element_type=jnp.float32)     # (S, S) f32
        s = jnp.where(causal, s, neg)

        m = jnp.max(s, axis=-1, keepdims=True)
        p = jnp.exp(s - m)
        l = jnp.sum(p, axis=-1, keepdims=True)
        # Causal diagonal guarantees l > 0.  For general (xformers BlockDiagonal*)
        # masks a fully-masked row would need a max(l, tiny) / row-valid guard.
        oh = jnp.dot(p.astype(matmul_dtype), v_heads[g],
                     preferred_element_type=jnp.float32)                # (S, D) f32
        # Normalize after the PV matmul (SxD elements instead of SxS); approx
        # reciprocal runs on the otherwise idle EUP slot in the production path.
        oh = oh * pl.reciprocal(l, approx=approx_recip)
        heads_out.append(oh.astype(matmul_dtype))

    # --- Single lane-dense output projection: (S, H*D) x (dim, H*D)^T. ---
    o_cat = jnp.concatenate(heads_out, axis=-1)                         # (S, H*D)
    out = jax.lax.dot_general(o_cat, wo_ref[...].astype(matmul_dtype), dn,
                              preferred_element_type=jnp.float32)

    # TODO(synk): general xformers AttentionBias (BlockDiagonal* masks) not modeled;
    # a causal mask is generated in-kernel instead.  Dropout is identity (p=0 / eval).
    o_ref[...] = out.astype(o_ref.dtype)


# ----------------------------- One-time weight prep (init time) -----------------------------

def make_freqs_cis(seq, head_dim, theta):
    freqs = 1.0 / (theta ** (jnp.arange(0, head_dim, 2, dtype=jnp.float32) / head_dim))
    t = jnp.arange(seq, dtype=jnp.float32)
    ang = jnp.outer(t, freqs)                       # (S, D//2)
    return jnp.cos(ang), jnp.sin(ang)


def _deinterleave_head_features(w, n_h, head_dim):
    """Permute the output features of a (n_h*D, dim) projection so each head's
    features are ordered [even pair elems | odd pair elems].  q.k is invariant under
    this shared per-head permutation, and it lets the kernel use cheap rotate-half
    RoPE with a single full-D score contraction."""
    dim_in = w.shape[1]
    perm = jnp.concatenate([jnp.arange(0, head_dim, 2), jnp.arange(1, head_dim, 2)])
    return w.reshape(n_h, head_dim, dim_in)[:, perm, :].reshape(n_h * head_dim, dim_in)


def prepare_attention_params(params, *, n_heads, n_kv_heads, head_dim,
                             matmul_dtype=jnp.float32):
    """Hoisted out of the forward: de-interleave wq/wk, fold 1/sqrt(D) into wq,
    concatenate the QKV weights into one lane-dense projection, cast to the matmul
    operand dtype.  Done once at parameter init / load time."""
    scale = 1.0 / math.sqrt(head_dim)
    wq_p = _deinterleave_head_features(params["wq"], n_heads, head_dim) * scale
    wk_p = _deinterleave_head_features(params["wk"], n_kv_heads, head_dim)
    wqkv = jnp.concatenate([wq_p, wk_p, params["wv"]], axis=0)   # (H*D+2*Hkv*D, dim)
    return {"wqkv": wqkv.astype(matmul_dtype),
            "wo": params["wo"].astype(matmul_dtype)}


# ----------------------------- Wrapper -----------------------------

def attention_forward(x, prepped, cos, sin, *, n_heads, n_kv_heads, head_dim,
                      matmul_dtype=jnp.float32, approx_recip=False):
    S, dim = x.shape
    kernel = functools.partial(
        _fused_attention_kernel,
        n_heads=n_heads, n_kv_heads=n_kv_heads, head_dim=head_dim,
        matmul_dtype=matmul_dtype, approx_recip=approx_recip,
    )
    vmem_spec = pl.BlockSpec(memory_space=pltpu.MemorySpace.VMEM)
    # Everything fits comfortably in VMEM at these shapes -> single full-block call
    # (no grid).  See header comment for the flash-tiled layout used at real sizes.
    return pl.pallas_call(
        kernel,
        out_shape=jax.ShapeDtypeStruct((S, dim), x.dtype),
        in_specs=[vmem_spec] * 5,
        out_specs=vmem_spec,
        compiler_params=pltpu.CompilerParams(vmem_limit_bytes=32 * 1024 * 1024),
    )(x, prepped["wqkv"], prepped["wo"], cos, sin)


# ----------------------------- Pure-JAX reference (original semantics) -----------------------------

def _apply_rotary_emb_interleaved(xq, xk, cos, sin):
    # xq: (S, Hq, D), xk: (S, Hk, D); complex pairs interleaved on the last dim.
    def rot(t):
        tf = t.astype(jnp.float32)
        tr = tf.reshape(*tf.shape[:-1], -1, 2)
        t0, t1 = tr[..., 0], tr[..., 1]
        c = cos[:, None, :]
        s = sin[:, None, :]
        o0 = t0 * c - t1 * s
        o1 = t0 * s + t1 * c
        return jnp.stack([o0, o1], axis=-1).reshape(t.shape).astype(t.dtype)
    return rot(xq), rot(xk)


def reference_forward(x, params, cos, sin, *, n_heads, n_kv_heads, head_dim):
    S, _ = x.shape
    repeats = n_heads // n_kv_heads
    xq = (x @ params["wq"].T).reshape(S, n_heads, head_dim)
    xk = (x @ params["wk"].T).reshape(S, n_kv_heads, head_dim)
    xv = (x @ params["wv"].T).reshape(S, n_kv_heads, head_dim)
    xq, xk = _apply_rotary_emb_interleaved(xq, xk, cos, sin)
    key = jnp.repeat(xk, repeats, axis=1)
    val = jnp.repeat(xv, repeats, axis=1)
    q = jnp.transpose(xq, (1, 0, 2))
    k = jnp.transpose(key, (1, 0, 2))
    v = jnp.transpose(val, (1, 0, 2))
    bias = jnp.where(jnp.arange(S)[:, None] >= jnp.arange(S)[None, :], 0.0,
                     jnp.float32(-1e30))
    s = jnp.einsum("hqd,hkd->hqk", q, k) / math.sqrt(head_dim) + bias[None]
    p = jax.nn.softmax(s, axis=-1)
    o = jnp.einsum("hqk,hkd->hqd", p, v)
    o = jnp.transpose(o, (1, 0, 2)).reshape(S, n_heads * head_dim)
    return o @ params["wo"].T


# ----------------------------- Main -----------------------------

if __name__ == "__main__":
    # TransformerModelArgs (small): dim=32, head_dim=16, n_heads=4, n_kv_heads=2,
    # dropout=0.0, rope_theta=10000.0, seqlen_sum=8
    dim, head_dim, n_heads, n_kv_heads, seq = 32, 16, 4, 2, 8
    rope_theta = 10000.0

    key = jax.random.PRNGKey(0)
    kx, kq, kk, kv, ko = jax.random.split(key, 5)

    x = jax.random.normal(kx, (seq, dim), dtype=jnp.float32)

    # PyTorch nn.Linear layout: (out, in), no bias.
    params = {
        "wq": jax.random.normal(kq, (n_heads * head_dim, dim), jnp.float32) * 0.05,
        "wk": jax.random.normal(kk, (n_kv_heads * head_dim, dim), jnp.float32) * 0.05,
        "wv": jax.random.normal(kv, (n_kv_heads * head_dim, dim), jnp.float32) * 0.05,
        "wo": jax.random.normal(ko, (dim, n_heads * head_dim), jnp.float32) * 0.05,
    }

    cos, sin = make_freqs_cis(seq, head_dim, rope_theta)

    # One-time weight prep (init time, NOT per forward call).
    prep_f32 = prepare_attention_params(
        params, n_heads=n_heads, n_kv_heads=n_kv_heads, head_dim=head_dim,
        matmul_dtype=jnp.float32)
    prep_bf16 = prepare_attention_params(
        params, n_heads=n_heads, n_kv_heads=n_kv_heads, head_dim=head_dim,
        matmul_dtype=jnp.bfloat16)

    ref = reference_forward(
        x, params, cos, sin,
        n_heads=n_heads, n_kv_heads=n_kv_heads, head_dim=head_dim,
    )

    # Exact-math path (f32 MXU operands, exact reciprocal) -- tight check.
    out_f32 = attention_forward(
        x, prep_f32, cos, sin,
        n_heads=n_heads, n_kv_heads=n_kv_heads, head_dim=head_dim,
        matmul_dtype=jnp.float32, approx_recip=False,
    )
    out_f32 = jax.block_until_ready(out_f32)
    assert out_f32.shape == (seq, dim)
    assert jnp.allclose(out_f32, ref, atol=1e-4, rtol=1e-4)

    # Production path (bf16 MXU operands + f32 accumulation, approx EUP reciprocal,
    # f32 softmax/RoPE elementwise) -- re-baselined tolerance per review.
    out_bf16 = attention_forward(
        x, prep_bf16, cos, sin,
        n_heads=n_heads, n_kv_heads=n_kv_heads, head_dim=head_dim,
        matmul_dtype=jnp.bfloat16, approx_recip=True,
    )
    out_bf16 = jax.block_until_ready(out_bf16)
    assert out_bf16.shape == (seq, dim)
    assert jnp.allclose(out_bf16, ref, atol=3e-2, rtol=3e-2)

    print("KERNEL_OK")
</pallas_src>

<mosaic_0001>
module attributes {stable_mosaic.version = 11 : i64} {
  func.func @_fused_attention_kernel(%arg0: memref<8x32xf32, #tpu.memory_space<vmem>>, %arg1: memref<128x32xf32, #tpu.memory_space<vmem>>, %arg2: memref<32x64xf32, #tpu.memory_space<vmem>>, %arg3: memref<8x8xf32, #tpu.memory_space<vmem>>, %arg4: memref<8x8xf32, #tpu.memory_space<vmem>>, %arg5: memref<8x32xf32, #tpu.memory_space<vmem>>) attributes {dimension_semantics = [], scalar_prefetch = 0 : i64, scratch_operands = 0 : i64, tpu.core_type = #tpu.core_type<tc>} {
    %c0 = arith.constant 0 : index
    %c0_0 = arith.constant 0 : index
    %0 = vector.load %arg0[%c0, %c0_0] : memref<8x32xf32, #tpu.memory_space<vmem>>, vector<8x32xf32>
    %c0_1 = arith.constant 0 : index
    %c0_2 = arith.constant 0 : index
    %1 = vector.load %arg1[%c0_1, %c0_2] : memref<128x32xf32, #tpu.memory_space<vmem>>, vector<128x32xf32>
    %cst = arith.constant dense<0.000000e+00> : vector<8x128xf32>
    %2 = tpu.matmul %0, %1, %cst {dimension_numbers = #tpu.dot_dimension_numbers<[1], [1], [0], [0], [0, 0, 1, 0], [], []>} : vector<8x32xf32>, vector<128x32xf32>, vector<8x128xf32> -> vector<8x128xf32>
    %c0_3 = arith.constant 0 : index
    %c0_4 = arith.constant 0 : index
    %3 = vector.load %arg3[%c0_3, %c0_4] : memref<8x8xf32, #tpu.memory_space<vmem>>, vector<8x8xf32>
    %c0_5 = arith.constant 0 : index
    %c0_6 = arith.constant 0 : index
    %4 = vector.load %arg4[%c0_5, %c0_6] : memref<8x8xf32, #tpu.memory_space<vmem>>, vector<8x8xf32>
    %5 = tpu.iota {dimensions = array<i32: 0>} : vector<8x8xi32>
    %6 = tpu.iota {dimensions = array<i32: 1>} : vector<8x8xi32>
    %7 = arith.cmpi sge, %5, %6 : vector<8x8xi32>
    %8 = vector.extract_strided_slice %2 {offsets = [0, 0], sizes = [8, 16], strides = [1, 1]} : vector<8x128xf32> to vector<8x16xf32>
    %9 = vector.extract_strided_slice %8 {offsets = [0, 0], sizes = [8, 8], strides = [1, 1]} : vector<8x16xf32> to vector<8x8xf32>
    %10 = vector.extract_strided_slice %8 {offsets = [0, 8], sizes = [8, 8], strides = [1, 1]} : vector<8x16xf32> to vector<8x8xf32>
    %11 = arith.mulf %9, %3 : vector<8x8xf32>
    %12 = arith.mulf %10, %4 : vector<8x8xf32>
    %13 = arith.subf %11, %12 : vector<8x8xf32>
    %14 = arith.mulf %9, %4 : vector<8x8xf32>
    %15 = arith.mulf %10, %3 : vector<8x8xf32>
    %16 = arith.addf %14, %15 : vector<8x8xf32>
    %17 = tpu.concatenate %13, %16 in 1 : vector<8x8xf32>, vector<8x8xf32> -> vector<8x16xf32>
    %18 = vector.extract_strided_slice %2 {offsets = [0, 16], sizes = [8, 16], strides = [1, 1]} : vector<8x128xf32> to vector<8x16xf32>
    %19 = vector.extract_strided_slice %18 {offsets = [0, 0], sizes = [8, 8], strides = [1, 1]} : vector<8x16xf32> to vector<8x8xf32>
    %20 = vector.extract_strided_slice %18 {offsets = [0, 8], sizes = [8, 8], strides = [1, 1]} : vector<8x16xf32> to vector<8x8xf32>
    %21 = arith.mulf %19, %3 : vector<8x8xf32>
    %22 = arith.mulf %20, %4 : vector<8x8xf32>
    %23 = arith.subf %21, %22 : vector<8x8xf32>
    %24 = arith.mulf %19, %4 : vector<8x8xf32>
    %25 = arith.mulf %20, %3 : vector<8x8xf32>
    %26 = arith.addf %24, %25 : vector<8x8xf32>
    %27 = tpu.concatenate %23, %26 in 1 : vector<8x8xf32>, vector<8x8xf32> -> vector<8x16xf32>
    %28 = vector.extract_strided_slice %2 {offsets = [0, 32], sizes = [8, 16], strides = [1, 1]} : vector<8x128xf32> to vector<8x16xf32>
    %29 = vector.extract_strided_slice %28 {offsets = [0, 0], sizes = [8, 8], strides = [1, 1]} : vector<8x16xf32> to vector<8x8xf32>
    %30 = vector.extract_strided_slice %28 {offsets = [0, 8], sizes = [8, 8], strides = [1, 1]} : vector<8x16xf32> to vector<8x8xf32>
    %31 = arith.mulf %29, %3 : vector<8x8xf32>
    %32 = arith.mulf %30, %4 : vector<8x8xf32>
    %33 = arith.subf %31, %32 : vector<8x8xf32>
    %34 = arith.mulf %29, %4 : vector<8x8xf32>
    %35 = arith.mulf %30, %3 : vector<8x8xf32>
    %36 = arith.addf %34, %35 : vector<8x8xf32>
    %37 = tpu.concatenate %33, %36 in 1 : vector<8x8xf32>, vector<8x8xf32> -> vector<8x16xf32>
    %38 = vector.extract_strided_slice %2 {offsets = [0, 48], sizes = [8, 16], strides = [1, 1]} : vector<8x128xf32> to vector<8x16xf32>
    %39 = vector.extract_strided_slice %38 {offsets = [0, 0], sizes = [8, 8], strides = [1, 1]} : vector<8x16xf32> to vector<8x8xf32>
    %40 = vector.extract_strided_slice %38 {offsets = [0, 8], sizes = [8, 8], strides = [1, 1]} : vector<8x16xf32> to vector<8x8xf32>
    %41 = arith.mulf %39, %3 : vector<8x8xf32>
    %42 = arith.mulf %40, %4 : vector<8x8xf32>
    %43 = arith.subf %41, %42 : vector<8x8xf32>
    %44 = arith.mulf %39, %4 : vector<8x8xf32>
    %45 = arith.mulf %40, %3 : vector<8x8xf32>
    %46 = arith.addf %44, %45 : vector<8x8xf32>
    %47 = tpu.concatenate %43, %46 in 1 : vector<8x8xf32>, vector<8x8xf32> -> vector<8x16xf32>
    %48 = vector.extract_strided_slice %2 {offsets = [0, 64], sizes = [8, 16], strides = [1, 1]} : vector<8x128xf32> to vector<8x16xf32>
    %49 = vector.extract_strided_slice %48 {offsets = [0, 0], sizes = [8, 8], strides = [1, 1]} : vector<8x16xf32> to vector<8x8xf32>
    %50 = vector.extract_strided_slice %48 {offsets = [0, 8], sizes = [8, 8], strides = [1, 1]} : vector<8x16xf32> to vector<8x8xf32>
    %51 = arith.mulf %49, %3 : vector<8x8xf32>
    %52 = arith.mulf %50, %4 : vector<8x8xf32>
    %53 = arith.subf %51, %52 : vector<8x8xf32>
    %54 = arith.mulf %49, %4 : vector<8x8xf32>
    %55 = arith.mulf %50, %3 : vector<8x8xf32>
    %56 = arith.addf %54, %55 : vector<8x8xf32>
    %57 = tpu.concatenate %53, %56 in 1 : vector<8x8xf32>, vector<8x8xf32> -> vector<8x16xf32>
    %58 = vector.extract_strided_slice %2 {offsets = [0, 80], sizes = [8, 16], strides = [1, 1]} : vector<8x128xf32> to vector<8x16xf32>
    %59 = vector.extract_strided_slice %58 {offsets = [0, 0], sizes = [8, 8], strides = [1, 1]} : vector<8x16xf32> to vector<8x8xf32>
    %60 = vector.extract_strided_slice %58 {offsets = [0, 8], sizes = [8, 8], strides = [1, 1]} : vector<8x16xf32> to vector<8x8xf32>
    %61 = arith.mulf %59, %3 : vector<8x8xf32>
    %62 = arith.mulf %60, %4 : vector<8x8xf32>
    %63 = arith.subf %61, %62 : vector<8x8xf32>
    %64 = arith.mulf %59, %4 : vector<8x8xf32>
    %65 = arith.mulf %60, %3 : vector<8x8xf32>
    %66 = arith.addf %64, %65 : vector<8x8xf32>
    %67 = tpu.concatenate %63, %66 in 1 : vector<8x8xf32>, vector<8x8xf32> -> vector<8x16xf32>
    %68 = vector.extract_strided_slice %2 {offsets = [0, 96], sizes = [8, 16], strides = [1, 1]} : vector<8x128xf32> to vector<8x16xf32>
    %69 = vector.extract_strided_slice %2 {offsets = [0, 112], sizes = [8, 16], strides = [1, 1]} : vector<8x128xf32> to vector<8x16xf32>
    %cst_7 = arith.constant dense<0.000000e+00> : vector<8x8xf32>
    %70 = tpu.matmul %17, %57, %cst_7 {dimension_numbers = #tpu.dot_dimension_numbers<[1], [1], [0], [0], [0, 0, 1, 0], [], []>} : vector<8x16xf32>, vector<8x16xf32>, vector<8x8xf32> -> vector<8x8xf32>
    %cst_8 = arith.constant -1.000000e+30 : f32
    %71 = vector.broadcast %cst_8 : f32 to vector<8x8xf32>
    %72 = arith.select %7, %70, %71 : vector<8x8xi1>, vector<8x8xf32>
    %cst_9 = arith.constant dense<0xFF800000> : vector<8xf32>
    %73 = vector.multi_reduction <maximumf>, %72, %cst_9 [1] : vector<8x8xf32> to vector<8xf32>
    %74 = vector.shape_cast %73 : vector<8xf32> to vector<8x1xf32>
    %75 = vector.broadcast %74 : vector<8x1xf32> to vector<8x8xf32>
    %76 = arith.subf %72, %75 : vector<8x8xf32>
    %77 = math.exp %76 : vector<8x8xf32>
    %cst_10 = arith.constant dense<0.000000e+00> : vector<8xf32>
    %78 = vector.multi_reduction <add>, %77, %cst_10 [1] : vector<8x8xf32> to vector<8xf32>
    %79 = vector.shape_cast %78 : vector<8xf32> to vector<8x1xf32>
    %cst_11 = arith.constant dense<0.000000e+00> : vector<8x16xf32>
    %80 = tpu.matmul %77, %68, %cst_11 {dimension_numbers = #tpu.dot_dimension_numbers<[1], [0], [0], [1], [0, 0, 1, 1], [], []>} : vector<8x8xf32>, vector<8x16xf32>, vector<8x16xf32> -> vector<8x16xf32>
    %81 = tpu.reciprocal %79 : vector<8x1xf32> -> vector<8x1xf32>
    %82 = vector.broadcast %81 : vector<8x1xf32> to vector<8x16xf32>
    %83 = arith.mulf %80, %82 : vector<8x16xf32>
    %cst_12 = arith.constant dense<0.000000e+00> : vector<8x8xf32>
    %84 = tpu.matmul %27, %57, %cst_12 {dimension_numbers = #tpu.dot_dimension_numbers<[1], [1], [0], [0], [0, 0, 1, 0], [], []>} : vector<8x16xf32>, vector<8x16xf32>, vector<8x8xf32> -> vector<8x8xf32>
    %cst_13 = arith.constant -1.000000e+30 : f32
    %85 = vector.broadcast %cst_13 : f32 to vector<8x8xf32>
    %86 = arith.select %7, %84, %85 : vector<8x8xi1>, vector<8x8xf32>
    %cst_14 = arith.constant dense<0xFF800000> : vector<8xf32>
    %87 = vector.multi_reduction <maximumf>, %86, %cst_14 [1] : vector<8x8xf32> to vector<8xf32>
    %88 = vector.shape_cast %87 : vector<8xf32> to vector<8x1xf32>
    %89 = vector.broadcast %88 : vector<8x1xf32> to vector<8x8xf32>
    %90 = arith.subf %86, %89 : vector<8x8xf32>
    %91 = math.exp %90 : vector<8x8xf32>
    %cst_15 = arith.constant dense<0.000000e+00> : vector<8xf32>
    %92 = vector.multi_reduction <add>, %91, %cst_15 [1] : vector<8x8xf32> to vector<8xf32>
    %93 = vector.shape_cast %92 : vector<8xf32> to vector<8x1xf32>
    %cst_16 = arith.constant dense<0.000000e+00> : vector<8x16xf32>
    %94 = tpu.matmul %91, %68, %cst_16 {dimension_numbers = #tpu.dot_dimension_numbers<[1], [0], [0], [1], [0, 0, 1, 1], [], []>} : vector<8x8xf32>, vector<8x16xf32>, vector<8x16xf32> -> vector<8x16xf32>
    %95 = tpu.reciprocal %93 : vector<8x1xf32> -> vector<8x1xf32>
    %96 = vector.broadcast %95 : vector<8x1xf32> to vector<8x16xf32>
    %97 = arith.mulf %94, %96 : vector<8x16xf32>
    %cst_17 = arith.constant dense<0.000000e+00> : vector<8x8xf32>
    %98 = tpu.matmul %37, %67, %cst_17 {dimension_numbers = #tpu.dot_dimension_numbers<[1], [1], [0], [0], [0, 0, 1, 0], [], []>} : vector<8x16xf32>, vector<8x16xf32>, vector<8x8xf32> -> vector<8x8xf32>
    %cst_18 = arith.constant -1.000000e+30 : f32
    %99 = vector.broadcast %cst_18 : f32 to vector<8x8xf32>
    %100 = arith.select %7, %98, %99 : vector<8x8xi1>, vector<8x8xf32>
    %cst_19 = arith.constant dense<0xFF800000> : vector<8xf32>
    %101 = vector.multi_reduction <maximumf>, %100, %cst_19 [1] : vector<8x8xf32> to vector<8xf32>
    %102 = vector.shape_cast %101 : vector<8xf32> to vector<8x1xf32>
    %103 = vector.broadcast %102 : vector<8x1xf32> to vector<8x8xf32>
    %104 = arith.subf %100, %103 : vector<8x8xf32>
    %105 = math.exp %104 : vector<8x8xf32>
    %cst_20 = arith.constant dense<0.000000e+00> : vector<8xf32>
    %106 = vector.multi_reduction <add>, %105, %cst_20 [1] : vector<8x8xf32> to vector<8xf32>
    %107 = vector.shape_cast %106 : vector<8xf32> to vector<8x1xf32>
    %cst_21 = arith.constant dense<0.000000e+00> : vector<8x16xf32>
    %108 = tpu.matmul %105, %69, %cst_21 {dimension_numbers = #tpu.dot_dimension_numbers<[1], [0], [0], [1], [0, 0, 1, 1], [], []>} : vector<8x8xf32>, vector<8x16xf32>, vector<8x16xf32> -> vector<8x16xf32>
    %109 = tpu.reciprocal %107 : vector<8x1xf32> -> vector<8x1xf32>
    %110 = vector.broadcast %109 : vector<8x1xf32> to vector<8x16xf32>
    %111 = arith.mulf %108, %110 : vector<8x16xf32>
    %cst_22 = arith.constant dense<0.000000e+00> : vector<8x8xf32>
    %112 = tpu.matmul %47, %67, %cst_22 {dimension_numbers = #tpu.dot_dimension_numbers<[1], [1], [0], [0], [0, 0, 1, 0], [], []>} : vector<8x16xf32>, vector<8x16xf32>, vector<8x8xf32> -> vector<8x8xf32>
    %cst_23 = arith.constant -1.000000e+30 : f32
    %113 = vector.broadcast %cst_23 : f32 to vector<8x8xf32>
    %114 = arith.select %7, %112, %113 : vector<8x8xi1>, vector<8x8xf32>
    %cst_24 = arith.constant dense<0xFF800000> : vector<8xf32>
    %115 = vector.multi_reduction <maximumf>, %114, %cst_24 [1] : vector<8x8xf32> to vector<8xf32>
    %116 = vector.shape_cast %115 : vector<8xf32> to vector<8x1xf32>
    %117 = vector.broadcast %116 : vector<8x1xf32> to vector<8x8xf32>
    %118 = arith.subf %114, %117 : vector<8x8xf32>
    %119 = math.exp %118 : vector<8x8xf32>
    %cst_25 = arith.constant dense<0.000000e+00> : vector<8xf32>
    %120 = vector.multi_reduction <add>, %119, %cst_25 [1] : vector<8x8xf32> to vector<8xf32>
    %121 = vector.shape_cast %120 : vector<8xf32> to vector<8x1xf32>
    %cst_26 = arith.constant dense<0.000000e+00> : vector<8x16xf32>
    %122 = tpu.matmul %119, %69, %cst_26 {dimension_numbers = #tpu.dot_dimension_numbers<[1], [0], [0], [1], [0, 0, 1, 1], [], []>} : vector<8x8xf32>, vector<8x16xf32>, vector<8x16xf32> -> vector<8x16xf32>
    %123 = tpu.reciprocal %121 : vector<8x1xf32> -> vector<8x1xf32>
    %124 = vector.broadcast %123 : vector<8x1xf32> to vector<8x16xf32>
    %125 = arith.mulf %122, %124 : vector<8x16xf32>
    %126 = tpu.concatenate %83, %97, %111, %125 in 1 : vector<8x16xf32>, vector<8x16xf32>, vector<8x16xf32>, vector<8x16xf32> -> vector<8x64xf32>
    %c0_27 = arith.constant 0 : index
    %c0_28 = arith.constant 0 : index
    %127 = vector.load %arg2[%c0_27, %c0_28] : memref<32x64xf32, #tpu.memory_space<vmem>>, vector<32x64xf32>
    %cst_29 = arith.constant dense<0.000000e+00> : vector<8x32xf32>
    %128 = tpu.matmul %126, %127, %cst_29 {dimension_numbers = #tpu.dot_dimension_numbers<[1], [1], [0], [0], [0, 0, 1, 0], [], []>} : vector<8x64xf32>, vector<32x64xf32>, vector<8x32xf32> -> vector<8x32xf32>
    %c0_30 = arith.constant 0 : index
    %c0_31 = arith.constant 0 : index
    %129 = vector.load %arg5[%c0_30, %c0_31] : memref<8x32xf32, #tpu.memory_space<vmem>>, vector<8x32xf32>
    tpu.vector_store %arg5[%c0_30, %c0_31], %128 {strides = array<i32>} : memref<8x32xf32, #tpu.memory_space<vmem>>, vector<8x32xf32>,
    return
  }
}

</mosaic_0001>

<llo_original>
// kernel: tpu_custom_call.1
$region0: #{tpu_custom_call.1}
  #allocation0 [shape = 'u32[]', space=smem, size = 0x4, offset = 0x4, fixed_abs, tag = 'smem constant byte address 0x4 - core index']
  #allocation1 [shape = 'u32[144,128]{1,0:T(1,128)}', space=vmem, size = 0x12000, scoped, tag = 'internal scratch']
  %s0 = inlined_call_operand.vmem [shape: f32[8,32], index: 0, kind: input, shape index: {}]
  %s1 = inlined_call_operand.vmem [shape: f32[128,32], index: 1, kind: input, shape index: {}]
  %s2 = inlined_call_operand.vmem [shape: f32[32,64], index: 2, kind: input, shape index: {}]
  %s3 = inlined_call_operand.vmem [shape: f32[8,8], index: 3, kind: input, shape index: {}]
  %s4 = inlined_call_operand.vmem [shape: f32[8,8], index: 4, kind: input, shape index: {}]
  %s5 = inlined_call_operand.hbm [shape: f32[8,32], index: 5, kind: output, shape index: {}]
  %s6 = sld [smem:[#allocation0]]
  $region30: #{tpu_custom_call.1} parent=0
    _
  %s8 = ssub.s32 1, %s6
  %s9 = scalar_select 0, %s8, %s6
  $region1: #{tpu_custom_call.1} parent=0
    #allocation2 [shape = 'u8[4096]{0}', space=vmem, size = 0x1000, scoped, tag = 'output window, operand 0, single buffered']
    #allocation3 [shape = 's32[1]{0}', space=sflag, size = 0x4, scoped, tag = 'scoped memory for tpu_custom_call.1']
    %10 = vsyncpa [#allocation3], 0
    // Predicated region
    $region2: #{tpu_custom_call.1} parent=1 // pred_check
      _
    $region3: #{tpu_custom_call.1} parent=1 // pred_check_branch
      %12 = sbr.rel (0) target = $region5
    $region4: #{tpu_custom_call.1} parent=1 // pred_region
      _
    $region5: #{tpu_custom_call.1} parent=1 // pred_fallthru
      _
    // Predicated region
    $region6: #{tpu_custom_call.1} parent=1 // pred_check
      _
    $region7: #{tpu_custom_call.1} parent=1 // pred_check_branch
      %14 = sbr.rel (0) target = $region9
    $region8: #{tpu_custom_call.1} parent=1 // pred_region
      _
    $region9: #{tpu_custom_call.1} parent=1 // pred_fallthru
      _
    // Predicated region
    $region10: #{tpu_custom_call.1} parent=1 // pred_check
      _
    $region11: #{tpu_custom_call.1} parent=1 // pred_check_branch
      %16 = sbr.rel (0) target = $region13
    $region12: #{tpu_custom_call.1} parent=1 // pred_region
      _
    $region13: #{tpu_custom_call.1} parent=1 // pred_fallthru
      _
    // Predicated region
    $region14: #{tpu_custom_call.1} parent=1 // pred_check
      _
    $region15: #{tpu_custom_call.1} parent=1 // pred_check_branch
      %18 = sbr.rel (0) target = $region17
    $region16: #{tpu_custom_call.1} parent=1 // pred_region
      _
    $region17: #{tpu_custom_call.1} parent=1 // pred_fallthru
      _
    // Predicated region
    $region18: #{tpu_custom_call.1} parent=1 // pred_check
      _
    $region19: #{tpu_custom_call.1} parent=1 // pred_check_branch
      %20 = sbr.rel (0) target = $region21
    $region20: #{tpu_custom_call.1} parent=1 // pred_region
      _
    $region21: #{tpu_custom_call.1} parent=1 // pred_fallthru
      _
    %v21 = vld [vmem:[%s0] sm:$0xff]
    %v22 = vld [vmem:[%s1] sm:$0xff]
    %v23 = vld [vmem:[%s1 + $0x8] sm:$0xff]
    %v24 = vld [vmem:[%s1 + $0x10] sm:$0xff]
    %v25 = vld [vmem:[%s1 + $0x18] sm:$0xff]
    %v26 = vld [vmem:[%s1 + $0x20] sm:$0xff]
    %v27 = vld [vmem:[%s1 + $0x28] sm:$0xff]
    %v28 = vld [vmem:[%s1 + $0x30] sm:$0xff]
    %v29 = vld [vmem:[%s1 + $0x38] sm:$0xff]
    %v30 = vld [vmem:[%s1 + $0x40] sm:$0xff]
    %v31 = vld [vmem:[%s1 + $0x48] sm:$0xff]
    %v32 = vld [vmem:[%s1 + $0x50] sm:$0xff]
    %v33 = vld [vmem:[%s1 + $0x58] sm:$0xff]
    %v34 = vld [vmem:[%s1 + $0x60] sm:$0xff]
    %v35 = vld [vmem:[%s1 + $0x68] sm:$0xff]
    %v36 = vld [vmem:[%s1 + $0x70] sm:$0xff]
    %v37 = vld [vmem:[%s1 + $0x78] sm:$0xff]
    %vm38 = vcmask 261120
    %v40 = vsel %vm38, %v21, 0
    %v43 = vsel %vm38, %v22, 0
    %v46 = vsel %vm38, %v23, 0
    %v49 = vsel %vm38, %v24, 0
    %v52 = vsel %vm38, %v25, 0
    %v55 = vsel %vm38, %v26, 0
    %v58 = vsel %vm38, %v27, 0
    %v61 = vsel %vm38, %v28, 0
    %v64 = vsel %vm38, %v29, 0
    %v67 = vsel %vm38, %v30, 0
    %v70 = vsel %vm38, %v31, 0
    %v73 = vsel %vm38, %v32, 0
    %v76 = vsel %vm38, %v33, 0
    %v79 = vsel %vm38, %v34, 0
    %v82 = vsel %vm38, %v35, 0
    %v85 = vsel %vm38, %v36, 0
    %v88 = vsel %vm38, %v37, 0
    %90 = vmatprep.subr.mxu0 0.0
    %91 = vmatpush1.xpose.msra.mxu0 %v43
    %92 = vmatprep.subr.mxu0 0.0
    %93 = vmatpush1.xpose.msra.mxu0 %v46
    %94 = vmatprep.subr.mxu0 0.0
    %95 = vmatpush1.xpose.msra.mxu0 %v49
    %96 = vmatprep.subr.mxu0 0.0
    %97 = vmatpush1.xpose.msra.mxu0 %v52
    %98 = vmatprep.subr.mxu0 0.0
    %99 = vmatpush1.xpose.msra.mxu0 %v55
    %100 = vmatprep.subr.mxu0 0.0
    %101 = vmatpush1.xpose.msra.mxu0 %v58
    %102 = vmatprep.subr.mxu0 0.0
    %103 = vmatpush1.xpose.msra.mxu0 %v61
    %104 = vmatprep.subr.mxu0 0.0
    %105 = vmatpush1.xpose.msra.mxu0 %v64
    %106 = vmatprep.subr.mxu0 0.0
    %107 = vmatpush1.xpose.msra.mxu0 %v67
    %108 = vmatprep.subr.mxu0 0.0
    %109 = vmatpush1.xpose.msra.mxu0 %v70
    %110 = vmatprep.subr.mxu0 0.0
    %111 = vmatpush1.xpose.msra.mxu0 %v73
    %112 = vmatprep.subr.mxu0 0.0
    %113 = vmatpush1.xpose.msra.mxu0 %v76
    %114 = vmatprep.subr.mxu0 0.0
    %115 = vmatpush1.xpose.msra.mxu0 %v79
    %116 = vmatprep.subr.mxu0 0.0
    %117 = vmatpush1.xpose.msra.mxu0 %v82
    %118 = vmatprep.subr.mxu0 0.0
    %119 = vmatpush1.xpose.msra.mxu0 %v85
    %120 = vmatprep.subr.mxu0 0.0
    %121 = vmatpush1.xpose.msra.mxu0 %v88
    %122 = vmatprep.subr.mxu0 0.0
    %123 = vmatpush1.xpose.msra.mxu0 0.0
    %124 = vmatprep.subr.mxu0 0.0
    %125 = vmatpush1.xpose.msra.mxu0 0.0
    %126 = vmatprep.subr.mxu0 0.0
    %127 = vmatpush1.xpose.msra.mxu0 0.0
    %128 = vmatprep.subr.mxu0 0.0
    %129 = vmatpush1.xpose.msra.mxu0 0.0
    %130 = vmatprep.subr.mxu0 0.0
    %131 = vmatpush1.xpose.msra.mxu0 0.0
    %132 = vmatprep.subr.mxu0 0.0
    %133 = vmatpush1.xpose.msra.mxu0 0.0
    %134 = vmatprep.subr.mxu0 0.0
    %135 = vmatpush1.xpose.msra.mxu0 0.0
    %136 = vmatprep.subr.mxu0 0.0
    %137 = vmatpush1.xpose.msra.mxu0 0.0
    %138 = vmatprep.subr.mxu0 0.0
    %139 = vmatpush1.xpose.msra.mxu0 0.0
    %140 = vmatprep.subr.mxu0 0.0
    %141 = vmatpush1.xpose.msra.mxu0 0.0
    %142 = vmatprep.subr.mxu0 0.0
    %143 = vmatpush1.xpose.msra.mxu0 0.0
    %144 = vmatprep.subr.mxu0 0.0
    %145 = vmatpush1.xpose.msra.mxu0 0.0
    %146 = vmatprep.subr.mxu0 0.0
    %147 = vmatpush1.xpose.msra.mxu0 0.0
    %148 = vmatprep.subr.mxu0 0.0
    %149 = vmatpush1.xpose.msra.mxu0 0.0
    %150 = vmatprep.subr.mxu0 0.0
    %151 = vmatpush1.xpose.msra.mxu0 0.0
    %152 = vmatprep.subr.mxu0 0.0
    %153 = vmatpush1.xpose.msra.mxu0 0.0
    %154 = vmatprep.mubr.f32.mxu0 0.0
    %155 = vmatmul.mubr.f32.gmra.mrb[0].mxu0 %v40
    %v156 = vpop.f32.mrb[0].mxu0
    %v157 = vadd.f32 0.0, %v156
    %v158 = vpop.f32.mrb[0].mxu0
    %159 = vdwg.mxu0
    %v160 = vld [vmem:[%s3] sm:$0xff]
    %v161 = vld [vmem:[%s4] sm:$0xff]
    %v162 = vlaneseq
    %v163 = vshrl.u32 %v162, 7
    %v164 = vlaneseq
    %v165 = vand.u32 %v164, 127
    %vm166 = vcmp.ge.s32.totalorder %v163, %v165
    %v167 = vmul.f32 %v157, %v160
    %169 = vrot.lane.b32.xlu0 %v161, 8
    %v170 = vpop.permute.xlu0 %169
    %v172 = vmul.f32 %v157, %v170
    %174 = vrot.lane.b32.xlu0 %v172, 120
    %v175 = vpop.permute.xlu0 %174
    %v177 = vsub.f32 %v167, %v175
    %v178 = vmul.f32 %v157, %v161
    %180 = vrot.lane.b32.xlu0 %v160, 8
    %v181 = vpop.permute.xlu0 %180
    %v183 = vmul.f32 %v157, %v181
    %185 = vrot.lane.b32.xlu0 %v183, 120
    %v186 = vpop.permute.xlu0 %185
    %v188 = vadd.f32 %v178, %v186
    %190 = vrot.lane.b32.xlu0 %v188, 8
    %v191 = vpop.permute.xlu0 %190
    %vm193 = vcmask 64512
    %v194 = vsel %vm193, %v177, %v191
    %195 = vrot.lane.b32.xlu0 %v160, 16
    %v196 = vpop.permute.xlu0 %195
    %v198 = vmul.f32 %v157, %v196
    %199 = vrot.lane.b32.xlu0 %v161, 24
    %v200 = vpop.permute.xlu0 %199
    %v202 = vmul.f32 %v157, %v200
    %204 = vrot.lane.b32.xlu0 %v202, 120
    %v205 = vpop.permute.xlu0 %204
    %v207 = vsub.f32 %v198, %v205
    %208 = vrot.lane.b32.xlu0 %v161, 16
    %v209 = vpop.permute.xlu0 %208
    %v211 = vmul.f32 %v157, %v209
    %212 = vrot.lane.b32.xlu0 %v160, 24
    %v213 = vpop.permute.xlu0 %212
    %v215 = vmul.f32 %v157, %v213
    %217 = vrot.lane.b32.xlu0 %v215, 120
    %v218 = vpop.permute.xlu0 %217
    %v220 = vadd.f32 %v211, %v218
    %222 = vrot.lane.b32.xlu0 %v207, 112
    %v223 = vpop.permute.xlu0 %222
    %226 = vrot.lane.b32.xlu0 %v220, 120
    %v227 = vpop.permute.xlu0 %226
    %v229 = vsel %vm193, %v223, %v227
    %230 = vrot.lane.b32.xlu0 %v160, 32
    %v231 = vpop.permute.xlu0 %230
    %v233 = vmul.f32 %v157, %v231
    %234 = vrot.lane.b32.xlu0 %v161, 40
    %v235 = vpop.permute.xlu0 %234
    %v237 = vmul.f32 %v157, %v235
    %239 = vrot.lane.b32.xlu0 %v237, 120
    %v240 = vpop.permute.xlu0 %239
    %v242 = vsub.f32 %v233, %v240
    %243 = vrot.lane.b32.xlu0 %v161, 32
    %v244 = vpop.permute.xlu0 %243
    %v246 = vmul.f32 %v157, %v244
    %247 = vrot.lane.b32.xlu0 %v160, 40
    %v248 = vpop.permute.xlu0 %247
    %v250 = vmul.f32 %v157, %v248
    %252 = vrot.lane.b32.xlu0 %v250, 120
    %v253 = vpop.permute.xlu0 %252
    %v255 = vadd.f32 %v246, %v253
    %257 = vrot.lane.b32.xlu0 %v242, 96
    %v258 = vpop.permute.xlu0 %257
    %261 = vrot.lane.b32.xlu0 %v255, 104
    %v262 = vpop.permute.xlu0 %261
    %v264 = vsel %vm193, %v258, %v262
    %265 = vrot.lane.b32.xlu0 %v160, 48
    %v266 = vpop.permute.xlu0 %265
    %v268 = vmul.f32 %v157, %v266
    %269 = vrot.lane.b32.xlu0 %v161, 56
    %v270 = vpop.permute.xlu0 %269
    %v272 = vmul.f32 %v157, %v270
    %274 = vrot.lane.b32.xlu0 %v272, 120
    %v275 = vpop.permute.xlu0 %274
    %v277 = vsub.f32 %v268, %v275
    %278 = vrot.lane.b32.xlu0 %v161, 48
    %v279 = vpop.permute.xlu0 %278
    %v281 = vmul.f32 %v157, %v279
    %282 = vrot.lane.b32.xlu0 %v160, 56
    %v283 = vpop.permute.xlu0 %282
    %v285 = vmul.f32 %v157, %v283
    %287 = vrot.lane.b32.xlu0 %v285, 120
    %v288 = vpop.permute.xlu0 %287
    %v290 = vadd.f32 %v281, %v288
    %292 = vrot.lane.b32.xlu0 %v277, 80
    %v293 = vpop.permute.xlu0 %292
    %296 = vrot.lane.b32.xlu0 %v290, 88
    %v297 = vpop.permute.xlu0 %296
    %v299 = vsel %vm193, %v293, %v297
    %300 = vrot.lane.b32.xlu0 %v160, 64
    %v301 = vpop.permute.xlu0 %300
    %v303 = vmul.f32 %v157, %v301
    %304 = vrot.lane.b32.xlu0 %v161, 72
    %v305 = vpop.permute.xlu0 %304
    %v307 = vmul.f32 %v157, %v305
    %309 = vrot.lane.b32.xlu0 %v307, 120
    %v310 = vpop.permute.xlu0 %309
    %v312 = vsub.f32 %v303, %v310
    %313 = vrot.lane.b32.xlu0 %v161, 64
    %v314 = vpop.permute.xlu0 %313
    %v316 = vmul.f32 %v157, %v314
    %317 = vrot.lane.b32.xlu0 %v160, 72
    %v318 = vpop.permute.xlu0 %317
    %v320 = vmul.f32 %v157, %v318
    %322 = vrot.lane.b32.xlu0 %v320, 120
    %v323 = vpop.permute.xlu0 %322
    %v325 = vadd.f32 %v316, %v323
    %327 = vrot.lane.b32.xlu0 %v312, 64
    %v328 = vpop.permute.xlu0 %327
    %331 = vrot.lane.b32.xlu0 %v325, 72
    %v332 = vpop.permute.xlu0 %331
    %v334 = vsel %vm193, %v328, %v332
    %335 = vrot.lane.b32.xlu0 %v160, 80
    %v336 = vpop.permute.xlu0 %335
    %v338 = vmul.f32 %v157, %v336
    %339 = vrot.lane.b32.xlu0 %v161, 88
    %v340 = vpop.permute.xlu0 %339
    %v342 = vmul.f32 %v157, %v340
    %344 = vrot.lane.b32.xlu0 %v342, 120
    %v345 = vpop.permute.xlu0 %344
    %v347 = vsub.f32 %v338, %v345
    %348 = vrot.lane.b32.xlu0 %v161, 80
    %v349 = vpop.permute.xlu0 %348
    %v351 = vmul.f32 %v157, %v349
    %352 = vrot.lane.b32.xlu0 %v160, 88
    %v353 = vpop.permute.xlu0 %352
    %v355 = vmul.f32 %v157, %v353
    %357 = vrot.lane.b32.xlu0 %v355, 120
    %v358 = vpop.permute.xlu0 %357
    %v360 = vadd.f32 %v351, %v358
    %362 = vrot.lane.b32.xlu0 %v347, 48
    %v363 = vpop.permute.xlu0 %362
    %366 = vrot.lane.b32.xlu0 %v360, 56
    %v367 = vpop.permute.xlu0 %366
    %v369 = vsel %vm193, %v363, %v367
    %vm370 = vcmask 130048
    %v372 = vsel %vm370, %v194, 0
    %v375 = vsel %vm370, %v334, 0
    %377 = vmatprep.subr.mxu0 0.0
    %378 = vmatpush1.xpose.msra.mxu0 %v375
    %379 = vmatprep.subr.mxu0 0.0
    %380 = vmatpush1.xpose.msra.mxu0 0.0
    %381 = vmatprep.subr.mxu0 0.0
    %382 = vmatpush1.xpose.msra.mxu0 0.0
    %383 = vmatprep.subr.mxu0 0.0
    %384 = vmatpush1.xpose.msra.mxu0 0.0
    %385 = vmatprep.subr.mxu0 0.0
    %386 = vmatpush1.xpose.msra.mxu0 0.0
    %387 = vmatprep.subr.mxu0 0.0
    %388 = vmatpush1.xpose.msra.mxu0 0.0
    %389 = vmatprep.subr.mxu0 0.0
    %390 = vmatpush1.xpose.msra.mxu0 0.0
    %391 = vmatprep.subr.mxu0 0.0
    %392 = vmatpush1.xpose.msra.mxu0 0.0
    %393 = vmatprep.subr.mxu0 0.0
    %394 = vmatpush1.xpose.msra.mxu0 0.0
    %395 = vmatprep.subr.mxu0 0.0
    %396 = vmatpush1.xpose.msra.mxu0 0.0
    %397 = vmatprep.subr.mxu0 0.0
    %398 = vmatpush1.xpose.msra.mxu0 0.0
    %399 = vmatprep.subr.mxu0 0.0
    %400 = vmatpush1.xpose.msra.mxu0 0.0
    %401 = vmatprep.subr.mxu0 0.0
    %402 = vmatpush1.xpose.msra.mxu0 0.0
    %403 = vmatprep.subr.mxu0 0.0
    %404 = vmatpush1.xpose.msra.mxu0 0.0
    %405 = vmatprep.subr.mxu0 0.0
    %406 = vmatpush1.xpose.msra.mxu0 0.0
    %407 = vmatprep.subr.mxu0 0.0
    %408 = vmatpush1.xpose.msra.mxu0 0.0
    %409 = vmatprep.subr.mxu0 0.0
    %410 = vmatpush1.xpose.msra.mxu0 0.0
    %411 = vmatprep.subr.mxu0 0.0
    %412 = vmatpush1.xpose.msra.mxu0 0.0
    %413 = vmatprep.subr.mxu0 0.0
    %414 = vmatpush1.xpose.msra.mxu0 0.0
    %415 = vmatprep.subr.mxu0 0.0
    %416 = vmatpush1.xpose.msra.mxu0 0.0
    %417 = vmatprep.subr.mxu0 0.0
    %418 = vmatpush1.xpose.msra.mxu0 0.0
    %419 = vmatprep.subr.mxu0 0.0
    %420 = vmatpush1.xpose.msra.mxu0 0.0
    %421 = vmatprep.subr.mxu0 0.0
    %422 = vmatpush1.xpose.msra.mxu0 0.0
    %423 = vmatprep.subr.mxu0 0.0
    %424 = vmatpush1.xpose.msra.mxu0 0.0
    %425 = vmatprep.subr.mxu0 0.0
    %426 = vmatpush1.xpose.msra.mxu0 0.0
    %427 = vmatprep.subr.mxu0 0.0
    %428 = vmatpush1.xpose.msra.mxu0 0.0
    %429 = vmatprep.subr.mxu0 0.0
    %430 = vmatpush1.xpose.msra.mxu0 0.0
    %431 = vmatprep.subr.mxu0 0.0
    %432 = vmatpush1.xpose.msra.mxu0 0.0
    %433 = vmatprep.subr.mxu0 0.0
    %434 = vmatpush1.xpose.msra.mxu0 0.0
    %435 = vmatprep.subr.mxu0 0.0
    %436 = vmatpush1.xpose.msra.mxu0 0.0
    %437 = vmatprep.subr.mxu0 0.0
    %438 = vmatpush1.xpose.msra.mxu0 0.0
    %439 = vmatprep.subr.mxu0 0.0
    %440 = vmatpush1.xpose.msra.mxu0 0.0
    %441 = vmatprep.mubr.f32.mxu0 0.0
    %442 = vmatmul.mubr.f32.gmra.mrb[0].mxu0 %v372
    %v443 = vpop.f32.mrb[0].mxu0
    %v444 = vadd.f32 0.0, %v443
    %v445 = vpop.f32.mrb[0].mxu0
    %446 = vdwg.mxu0
    %v447 = vsel %vm166, %v444, -1e+30
    %v448 = vsel %vm193, %v447, -inf
    %449 = vmax.xlane.f32.xlu0 %v448
    %v450 = vpop.xlane.xlu0 %449
    %v451 = vsub.f32 %v447, %v450
    %v452 = vmul.f32 %v451, 1.442695
    %v453 = vpow.pop %v452
    %v454 = vsel %vm193, %v453, 0.0
    %455 = vadd.xlane.f32.xlu0 %v454
    %v456 = vpop.xlane.xlu0 %455
    %458 = vrot.lane.b32.xlu0 %v157, 32
    %v459 = vpop.permute.xlu0 %458
    %v462 = vsel %vm193, %v453, 0
    %464 = vmatprep.subr.mxu0 0.0
    %465 = vmatpush1.msra.mxu0 %v459
    %466 = vmatprep.subr.mxu0 0.0
    %467 = vmatpush1.msra.mxu0 0.0
    %468 = vmatprep.subr.mxu0 0.0
    %469 = vmatpush1.msra.mxu0 0.0
    %470 = vmatprep.subr.mxu0 0.0
    %471 = vmatpush1.msra.mxu0 0.0
    %472 = vmatprep.subr.mxu0 0.0
    %473 = vmatpush1.msra.mxu0 0.0
    %474 = vmatprep.subr.mxu0 0.0
    %475 = vmatpush1.msra.mxu0 0.0
    %476 = vmatprep.subr.mxu0 0.0
    %477 = vmatpush1.msra.mxu0 0.0
    %478 = vmatprep.subr.mxu0 0.0
    %479 = vmatpush1.msra.mxu0 0.0
    %480 = vmatprep.subr.mxu0 0.0
    %481 = vmatpush1.msra.mxu0 0.0
    %482 = vmatprep.subr.mxu0 0.0
    %483 = vmatpush1.msra.mxu0 0.0
    %484 = vmatprep.subr.mxu0 0.0
    %485 = vmatpush1.msra.mxu0 0.0
    %486 = vmatprep.subr.mxu0 0.0
    %487 = vmatpush1.msra.mxu0 0.0
    %488 = vmatprep.subr.mxu0 0.0
    %489 = vmatpush1.msra.mxu0 0.0
    %490 = vmatprep.subr.mxu0 0.0
    %491 = vmatpush1.msra.mxu0 0.0
    %492 = vmatprep.subr.mxu0 0.0
    %493 = vmatpush1.msra.mxu0 0.0
    %494 = vmatprep.subr.mxu0 0.0
    %495 = vmatpush1.msra.mxu0 0.0
    %496 = vmatprep.subr.mxu0 0.0
    %497 = vmatpush1.msra.mxu0 0.0
    %498 = vmatprep.subr.mxu0 0.0
    %499 = vmatpush1.msra.mxu0 0.0
    %500 = vmatprep.subr.mxu0 0.0
    %501 = vmatpush1.msra.mxu0 0.0
    %502 = vmatprep.subr.mxu0 0.0
    %503 = vmatpush1.msra.mxu0 0.0
    %504 = vmatprep.subr.mxu0 0.0
    %505 = vmatpush1.msra.mxu0 0.0
    %506 = vmatprep.subr.mxu0 0.0
    %507 = vmatpush1.msra.mxu0 0.0
    %508 = vmatprep.subr.mxu0 0.0
    %509 = vmatpush1.msra.mxu0 0.0
    %510 = vmatprep.subr.mxu0 0.0
    %511 = vmatpush1.msra.mxu0 0.0
    %512 = vmatprep.subr.mxu0 0.0
    %513 = vmatpush1.msra.mxu0 0.0
    %514 = vmatprep.subr.mxu0 0.0
    %515 = vmatpush1.msra.mxu0 0.0
    %516 = vmatprep.subr.mxu0 0.0
    %517 = vmatpush1.msra.mxu0 0.0
    %518 = vmatprep.subr.mxu0 0.0
    %519 = vmatpush1.msra.mxu0 0.0
    %520 = vmatprep.subr.mxu0 0.0
    %521 = vmatpush1.msra.mxu0 0.0
    %522 = vmatprep.subr.mxu0 0.0
    %523 = vmatpush1.msra.mxu0 0.0
    %524 = vmatprep.subr.mxu0 0.0
    %525 = vmatpush1.msra.mxu0 0.0
    %526 = vmatprep.subr.mxu0 0.0
    %527 = vmatpush1.msra.mxu0 0.0
    %528 = vmatprep.mubr.f32.mxu0 0.0
    %529 = vmatmul.mubr.f32.gmra.mrb[0].mxu0 %v462
    %v530 = vpop.f32.mrb[0].mxu0
    %v531 = vadd.f32 0.0, %v530
    %v532 = vpop.f32.mrb[0].mxu0
    %533 = vdwg.mxu0
    %v534 = vrcp.pop %v456
    %v535 = vmul.f32 %v531, %v534
    %v537 = vsel %vm370, %v229, 0
    %539 = vmatprep.subr.mxu0 0.0
    %540 = vmatpush1.xpose.msra.mxu0 %v375
    %541 = vmatprep.subr.mxu0 0.0
    %542 = vmatpush1.xpose.msra.mxu0 0.0
    %543 = vmatprep.subr.mxu0 0.0
    %544 = vmatpush1.xpose.msra.mxu0 0.0
    %545 = vmatprep.subr.mxu0 0.0
    %546 = vmatpush1.xpose.msra.mxu0 0.0
    %547 = vmatprep.subr.mxu0 0.0
    %548 = vmatpush1.xpose.msra.mxu0 0.0
    %549 = vmatprep.subr.mxu0 0.0
    %550 = vmatpush1.xpose.msra.mxu0 0.0
    %551 = vmatprep.subr.mxu0 0.0
    %552 = vmatpush1.xpose.msra.mxu0 0.0
    %553 = vmatprep.subr.mxu0 0.0
    %554 = vmatpush1.xpose.msra.mxu0 0.0
    %555 = vmatprep.subr.mxu0 0.0
    %556 = vmatpush1.xpose.msra.mxu0 0.0
    %557 = vmatprep.subr.mxu0 0.0
    %558 = vmatpush1.xpose.msra.mxu0 0.0
    %559 = vmatprep.subr.mxu0 0.0
    %560 = vmatpush1.xpose.msra.mxu0 0.0
    %561 = vmatprep.subr.mxu0 0.0
    %562 = vmatpush1.xpose.msra.mxu0 0.0
    %563 = vmatprep.subr.mxu0 0.0
    %564 = vmatpush1.xpose.msra.mxu0 0.0
    %565 = vmatprep.subr.mxu0 0.0
    %566 = vmatpush1.xpose.msra.mxu0 0.0
    %567 = vmatprep.subr.mxu0 0.0
    %568 = vmatpush1.xpose.msra.mxu0 0.0
    %569 = vmatprep.subr.mxu0 0.0
    %570 = vmatpush1.xpose.msra.mxu0 0.0
    %571 = vmatprep.subr.mxu0 0.0
    %572 = vmatpush1.xpose.msra.mxu0 0.0
    %573 = vmatprep.subr.mxu0 0.0
    %574 = vmatpush1.xpose.msra.mxu0 0.0
    %575 = vmatprep.subr.mxu0 0.0
    %576 = vmatpush1.xpose.msra.mxu0 0.0
    %577 = vmatprep.subr.mxu0 0.0
    %578 = vmatpush1.xpose.msra.mxu0 0.0
    %579 = vmatprep.subr.mxu0 0.0
    %580 = vmatpush1.xpose.msra.mxu0 0.0
    %581 = vmatprep.subr.mxu0 0.0
    %582 = vmatpush1.xpose.msra.mxu0 0.0
    %583 = vmatprep.subr.mxu0 0.0
    %584 = vmatpush1.xpose.msra.mxu0 0.0
    %585 = vmatprep.subr.mxu0 0.0
    %586 = vmatpush1.xpose.msra.mxu0 0.0
    %587 = vmatprep.subr.mxu0 0.0
    %588 = vmatpush1.xpose.msra.mxu0 0.0
    %589 = vmatprep.subr.mxu0 0.0
    %590 = vmatpush1.xpose.msra.mxu0 0.0
    %591 = vmatprep.subr.mxu0 0.0
    %592 = vmatpush1.xpose.msra.mxu0 0.0
    %593 = vmatprep.subr.mxu0 0.0
    %594 = vmatpush1.xpose.msra.mxu0 0.0
    %595 = vmatprep.subr.mxu0 0.0
    %596 = vmatpush1.xpose.msra.mxu0 0.0
    %597 = vmatprep.subr.mxu0 0.0
    %598 = vmatpush1.xpose.msra.mxu0 0.0
    %599 = vmatprep.subr.mxu0 0.0
    %600 = vmatpush1.xpose.msra.mxu0 0.0
    %601 = vmatprep.subr.mxu0 0.0
    %602 = vmatpush1.xpose.msra.mxu0 0.0
    %603 = vmatprep.mubr.f32.mxu0 0.0
    %604 = vmatmul.mubr.f32.gmra.mrb[0].mxu0 %v537
    %v605 = vpop.f32.mrb[0].mxu0
    %v606 = vadd.f32 0.0, %v605
    %v607 = vpop.f32.mrb[0].mxu0
    %608 = vdwg.mxu0
    %v609 = vsel %vm166, %v606, -1e+30
    %v610 = vsel %vm193, %v609, -inf
    %611 = vmax.xlane.f32.xlu0 %v610
    %v612 = vpop.xlane.xlu0 %611
    %v613 = vsub.f32 %v609, %v612
    %v614 = vmul.f32 %v613, 1.442695
    %v615 = vpow.pop %v614
    %v616 = vsel %vm193, %v615, 0.0
    %617 = vadd.xlane.f32.xlu0 %v616
    %v618 = vpop.xlane.xlu0 %617
    %v620 = vsel %vm193, %v615, 0
    %622 = vmatprep.subr.mxu0 0.0
    %623 = vmatpush1.msra.mxu0 %v459
    %624 = vmatprep.subr.mxu0 0.0
    %625 = vmatpush1.msra.mxu0 0.0
    %626 = vmatprep.subr.mxu0 0.0
    %627 = vmatpush1.msra.mxu0 0.0
    %628 = vmatprep.subr.mxu0 0.0
    %629 = vmatpush1.msra.mxu0 0.0
    %630 = vmatprep.subr.mxu0 0.0
    %631 = vmatpush1.msra.mxu0 0.0
    %632 = vmatprep.subr.mxu0 0.0
    %633 = vmatpush1.msra.mxu0 0.0
    %634 = vmatprep.subr.mxu0 0.0
    %635 = vmatpush1.msra.mxu0 0.0
    %636 = vmatprep.subr.mxu0 0.0
    %637 = vmatpush1.msra.mxu0 0.0
    %638 = vmatprep.subr.mxu0 0.0
    %639 = vmatpush1.msra.mxu0 0.0
    %640 = vmatprep.subr.mxu0 0.0
    %641 = vmatpush1.msra.mxu0 0.0
    %642 = vmatprep.subr.mxu0 0.0
    %643 = vmatpush1.msra.mxu0 0.0
    %644 = vmatprep.subr.mxu0 0.0
    %645 = vmatpush1.msra.mxu0 0.0
    %646 = vmatprep.subr.mxu0 0.0
    %647 = vmatpush1.msra.mxu0 0.0
    %648 = vmatprep.subr.mxu0 0.0
    %649 = vmatpush1.msra.mxu0 0.0
    %650 = vmatprep.subr.mxu0 0.0
    %651 = vmatpush1.msra.mxu0 0.0
    %652 = vmatprep.subr.mxu0 0.0
    %653 = vmatpush1.msra.mxu0 0.0
    %654 = vmatprep.subr.mxu0 0.0
    %655 = vmatpush1.msra.mxu0 0.0
    %656 = vmatprep.subr.mxu0 0.0
    %657 = vmatpush1.msra.mxu0 0.0
    %658 = vmatprep.subr.mxu0 0.0
    %659 = vmatpush1.msra.mxu0 0.0
    %660 = vmatprep.subr.mxu0 0.0
    %661 = vmatpush1.msra.mxu0 0.0
    %662 = vmatprep.subr.mxu0 0.0
    %663 = vmatpush1.msra.mxu0 0.0
    %664 = vmatprep.subr.mxu0 0.0
    %665 = vmatpush1.msra.mxu0 0.0
    %666 = vmatprep.subr.mxu0 0.0
    %667 = vmatpush1.msra.mxu0 0.0
    %668 = vmatprep.subr.mxu0 0.0
    %669 = vmatpush1.msra.mxu0 0.0
    %670 = vmatprep.subr.mxu0 0.0
    %671 = vmatpush1.msra.mxu0 0.0
    %672 = vmatprep.subr.mxu0 0.0
    %673 = vmatpush1.msra.mxu0 0.0
    %674 = vmatprep.subr.mxu0 0.0
    %675 = vmatpush1.msra.mxu0 0.0
    %676 = vmatprep.subr.mxu0 0.0
    %677 = vmatpush1.msra.mxu0 0.0
    %678 = vmatprep.subr.mxu0 0.0
    %679 = vmatpush1.msra.mxu0 0.0
    %680 = vmatprep.subr.mxu0 0.0
    %681 = vmatpush1.msra.mxu0 0.0
    %682 = vmatprep.subr.mxu0 0.0
    %683 = vmatpush1.msra.mxu0 0.0
    %684 = vmatprep.subr.mxu0 0.0
    %685 = vmatpush1.msra.mxu0 0.0
    %686 = vmatprep.mubr.f32.mxu0 0.0
    %687 = vmatmul.mubr.f32.gmra.mrb[0].mxu0 %v620
    %v688 = vpop.f32.mrb[0].mxu0
    %v689 = vadd.f32 0.0, %v688
    %v690 = vpop.f32.mrb[0].mxu0
    %691 = vdwg.mxu0
    %v692 = vrcp.pop %v618
    %v693 = vmul.f32 %v689, %v692
    %v695 = vsel %vm370, %v264, 0
    %v698 = vsel %vm370, %v369, 0
    %700 = vmatprep.subr.mxu0 0.0
    %701 = vmatpush1.xpose.msra.mxu0 %v698
    %702 = vmatprep.subr.mxu0 0.0
    %703 = vmatpush1.xpose.msra.mxu0 0.0
    %704 = vmatprep.subr.mxu0 0.0
    %705 = vmatpush1.xpose.msra.mxu0 0.0
    %706 = vmatprep.subr.mxu0 0.0
    %707 = vmatpush1.xpose.msra.mxu0 0.0
    %708 = vmatprep.subr.mxu0 0.0
    %709 = vmatpush1.xpose.msra.mxu0 0.0
    %710 = vmatprep.subr.mxu0 0.0
    %711 = vmatpush1.xpose.msra.mxu0 0.0
    %712 = vmatprep.subr.mxu0 0.0
    %713 = vmatpush1.xpose.msra.mxu0 0.0
    %714 = vmatprep.subr.mxu0 0.0
    %715 = vmatpush1.xpose.msra.mxu0 0.0
    %716 = vmatprep.subr.mxu0 0.0
    %717 = vmatpush1.xpose.msra.mxu0 0.0
    %718 = vmatprep.subr.mxu0 0.0
    %719 = vmatpush1.xpose.msra.mxu0 0.0
    %720 = vmatprep.subr.mxu0 0.0
    %721 = vmatpush1.xpose.msra.mxu0 0.0
    %722 = vmatprep.subr.mxu0 0.0
    %723 = vmatpush1.xpose.msra.mxu0 0.0
    %724 = vmatprep.subr.mxu0 0.0
    %725 = vmatpush1.xpose.msra.mxu0 0.0
    %726 = vmatprep.subr.mxu0 0.0
    %727 = vmatpush1.xpose.msra.mxu0 0.0
    %728 = vmatprep.subr.mxu0 0.0
    %729 = vmatpush1.xpose.msra.mxu0 0.0
    %730 = vmatprep.subr.mxu0 0.0
    %731 = vmatpush1.xpose.msra.mxu0 0.0
    %732 = vmatprep.subr.mxu0 0.0
    %733 = vmatpush1.xpose.msra.mxu0 0.0
    %734 = vmatprep.subr.mxu0 0.0
    %735 = vmatpush1.xpose.msra.mxu0 0.0
    %736 = vmatprep.subr.mxu0 0.0
    %737 = vmatpush1.xpose.msra.mxu0 0.0
    %738 = vmatprep.subr.mxu0 0.0
    %739 = vmatpush1.xpose.msra.mxu0 0.0
    %740 = vmatprep.subr.mxu0 0.0
    %741 = vmatpush1.xpose.msra.mxu0 0.0
    %742 = vmatprep.subr.mxu0 0.0
    %743 = vmatpush1.xpose.msra.mxu0 0.0
    %744 = vmatprep.subr.mxu0 0.0
    %745 = vmatpush1.xpose.msra.mxu0 0.0
    %746 = vmatprep.subr.mxu0 0.0
    %747 = vmatpush1.xpose.msra.mxu0 0.0
    %748 = vmatprep.subr.mxu0 0.0
    %749 = vmatpush1.xpose.msra.mxu0 0.0
    %750 = vmatprep.subr.mxu0 0.0
    %751 = vmatpush1.xpose.msra.mxu0 0.0
    %752 = vmatprep.subr.mxu0 0.0
    %753 = vmatpush1.xpose.msra.mxu0 0.0
    %754 = vmatprep.subr.mxu0 0.0
    %755 = vmatpush1.xpose.msra.mxu0 0.0
    %756 = vmatprep.subr.mxu0 0.0
    %757 = vmatpush1.xpose.msra.mxu0 0.0
    %758 = vmatprep.subr.mxu0 0.0
    %759 = vmatpush1.xpose.msra.mxu0 0.0
    %760 = vmatprep.subr.mxu0 0.0
    %761 = vmatpush1.xpose.msra.mxu0 0.0
    %762 = vmatprep.subr.mxu0 0.0
    %763 = vmatpush1.xpose.msra.mxu0 0.0
    %764 = vmatprep.mubr.f32.mxu0 0.0
    %765 = vmatmul.mubr.f32.gmra.mrb[0].mxu0 %v695
    %v766 = vpop.f32.mrb[0].mxu0
    %v767 = vadd.f32 0.0, %v766
    %v768 = vpop.f32.mrb[0].mxu0
    %769 = vdwg.mxu0
    %v770 = vsel %vm166, %v767, -1e+30
    %v771 = vsel %vm193, %v770, -inf
    %772 = vmax.xlane.f32.xlu0 %v771
    %v773 = vpop.xlane.xlu0 %772
    %v774 = vsub.f32 %v770, %v773
    %v775 = vmul.f32 %v774, 1.442695
    %v776 = vpow.pop %v775
    %v777 = vsel %vm193, %v776, 0.0
    %778 = vadd.xlane.f32.xlu0 %v777
    %v779 = vpop.xlane.xlu0 %778
    %780 = vrot.lane.b32.xlu0 %v157, 16
    %v781 = vpop.permute.xlu0 %780
    %v784 = vsel %vm193, %v776, 0
    %786 = vmatprep.subr.mxu0 0.0
    %787 = vmatpush1.msra.mxu0 %v781
    %788 = vmatprep.subr.mxu0 0.0
    %789 = vmatpush1.msra.mxu0 0.0
    %790 = vmatprep.subr.mxu0 0.0
    %791 = vmatpush1.msra.mxu0 0.0
    %792 = vmatprep.subr.mxu0 0.0
    %793 = vmatpush1.msra.mxu0 0.0
    %794 = vmatprep.subr.mxu0 0.0
    %795 = vmatpush1.msra.mxu0 0.0
    %796 = vmatprep.subr.mxu0 0.0
    %797 = vmatpush1.msra.mxu0 0.0
    %798 = vmatprep.subr.mxu0 0.0
    %799 = vmatpush1.msra.mxu0 0.0
    %800 = vmatprep.subr.mxu0 0.0
    %801 = vmatpush1.msra.mxu0 0.0
    %802 = vmatprep.subr.mxu0 0.0
    %803 = vmatpush1.msra.mxu0 0.0
    %804 = vmatprep.subr.mxu0 0.0
    %805 = vmatpush1.msra.mxu0 0.0
    %806 = vmatprep.subr.mxu0 0.0
    %807 = vmatpush1.msra.mxu0 0.0
    %808 = vmatprep.subr.mxu0 0.0
    %809 = vmatpush1.msra.mxu0 0.0
    %810 = vmatprep.subr.mxu0 0.0
    %811 = vmatpush1.msra.mxu0 0.0
    %812 = vmatprep.subr.mxu0 0.0
    %813 = vmatpush1.msra.mxu0 0.0
    %814 = vmatprep.subr.mxu0 0.0
    %815 = vmatpush1.msra.mxu0 0.0
    %816 = vmatprep.subr.mxu0 0.0
    %817 = vmatpush1.msra.mxu0 0.0
    %818 = vmatprep.subr.mxu0 0.0
    %819 = vmatpush1.msra.mxu0 0.0
    %820 = vmatprep.subr.mxu0 0.0
    %821 = vmatpush1.msra.mxu0 0.0
    %822 = vmatprep.subr.mxu0 0.0
    %823 = vmatpush1.msra.mxu0 0.0
    %824 = vmatprep.subr.mxu0 0.0
    %825 = vmatpush1.msra.mxu0 0.0
    %826 = vmatprep.subr.mxu0 0.0
    %827 = vmatpush1.msra.mxu0 0.0
    %828 = vmatprep.subr.mxu0 0.0
    %829 = vmatpush1.msra.mxu0 0.0
    %830 = vmatprep.subr.mxu0 0.0
    %831 = vmatpush1.msra.mxu0 0.0
    %832 = vmatprep.subr.mxu0 0.0
    %833 = vmatpush1.msra.mxu0 0.0
    %834 = vmatprep.subr.mxu0 0.0
    %835 = vmatpush1.msra.mxu0 0.0
    %836 = vmatprep.subr.mxu0 0.0
    %837 = vmatpush1.msra.mxu0 0.0
    %838 = vmatprep.subr.mxu0 0.0
    %839 = vmatpush1.msra.mxu0 0.0
    %840 = vmatprep.subr.mxu0 0.0
    %841 = vmatpush1.msra.mxu0 0.0
    %842 = vmatprep.subr.mxu0 0.0
    %843 = vmatpush1.msra.mxu0 0.0
    %844 = vmatprep.subr.mxu0 0.0
    %845 = vmatpush1.msra.mxu0 0.0
    %846 = vmatprep.subr.mxu0 0.0
    %847 = vmatpush1.msra.mxu0 0.0
    %848 = vmatprep.subr.mxu0 0.0
    %849 = vmatpush1.msra.mxu0 0.0
    %850 = vmatprep.mubr.f32.mxu0 0.0
    %851 = vmatmul.mubr.f32.gmra.mrb[0].mxu0 %v784
    %v852 = vpop.f32.mrb[0].mxu0
    %v853 = vadd.f32 0.0, %v852
    %v854 = vpop.f32.mrb[0].mxu0
    %855 = vdwg.mxu0
    %v856 = vrcp.pop %v779
    %v857 = vmul.f32 %v853, %v856
    %v859 = vsel %vm370, %v299, 0
    %861 = vmatprep.subr.mxu0 0.0
    %862 = vmatpush1.xpose.msra.mxu0 %v698
    %863 = vmatprep.subr.mxu0 0.0
    %864 = vmatpush1.xpose.msra.mxu0 0.0
    %865 = vmatprep.subr.mxu0 0.0
    %866 = vmatpush1.xpose.msra.mxu0 0.0
    %867 = vmatprep.subr.mxu0 0.0
    %868 = vmatpush1.xpose.msra.mxu0 0.0
    %869 = vmatprep.subr.mxu0 0.0
    %870 = vmatpush1.xpose.msra.mxu0 0.0
    %871 = vmatprep.subr.mxu0 0.0
    %872 = vmatpush1.xpose.msra.mxu0 0.0
    %873 = vmatprep.subr.mxu0 0.0
    %874 = vmatpush1.xpose.msra.mxu0 0.0
    %875 = vmatprep.subr.mxu0 0.0
    %876 = vmatpush1.xpose.msra.mxu0 0.0
    %877 = vmatprep.subr.mxu0 0.0
    %878 = vmatpush1.xpose.msra.mxu0 0.0
    %879 = vmatprep.subr.mxu0 0.0
    %880 = vmatpush1.xpose.msra.mxu0 0.0
    %881 = vmatprep.subr.mxu0 0.0
    %882 = vmatpush1.xpose.msra.mxu0 0.0
    %883 = vmatprep.subr.mxu0 0.0
    %884 = vmatpush1.xpose.msra.mxu0 0.0
    %885 = vmatprep.subr.mxu0 0.0
    %886 = vmatpush1.xpose.msra.mxu0 0.0
    %887 = vmatprep.subr.mxu0 0.0
    %888 = vmatpush1.xpose.msra.mxu0 0.0
    %889 = vmatprep.subr.mxu0 0.0
    %890 = vmatpush1.xpose.msra.mxu0 0.0
    %891 = vmatprep.subr.mxu0 0.0
    %892 = vmatpush1.xpose.msra.mxu0 0.0
    %893 = vmatprep.subr.mxu0 0.0
    %894 = vmatpush1.xpose.msra.mxu0 0.0
    %895 = vmatprep.subr.mxu0 0.0
    %896 = vmatpush1.xpose.msra.mxu0 0.0
    %897 = vmatprep.subr.mxu0 0.0
    %898 = vmatpush1.xpose.msra.mxu0 0.0
    %899 = vmatprep.subr.mxu0 0.0
    %900 = vmatpush1.xpose.msra.mxu0 0.0
    %901 = vmatprep.subr.mxu0 0.0
    %902 = vmatpush1.xpose.msra.mxu0 0.0
    %903 = vmatprep.subr.mxu0 0.0
    %904 = vmatpush1.xpose.msra.mxu0 0.0
    %905 = vmatprep.subr.mxu0 0.0
    %906 = vmatpush1.xpose.msra.mxu0 0.0
    %907 = vmatprep.subr.mxu0 0.0
    %908 = vmatpush1.xpose.msra.mxu0 0.0
    %909 = vmatprep.subr.mxu0 0.0
    %910 = vmatpush1.xpose.msra.mxu0 0.0
    %911 = vmatprep.subr.mxu0 0.0
    %912 = vmatpush1.xpose.msra.mxu0 0.0
    %913 = vmatprep.subr.mxu0 0.0
    %914 = vmatpush1.xpose.msra.mxu0 0.0
    %915 = vmatprep.subr.mxu0 0.0
    %916 = vmatpush1.xpose.msra.mxu0 0.0
    %917 = vmatprep.subr.mxu0 0.0
    %918 = vmatpush1.xpose.msra.mxu0 0.0
    %919 = vmatprep.subr.mxu0 0.0
    %920 = vmatpush1.xpose.msra.mxu0 0.0
    %921 = vmatprep.subr.mxu0 0.0
    %922 = vmatpush1.xpose.msra.mxu0 0.0
    %923 = vmatprep.subr.mxu0 0.0
    %924 = vmatpush1.xpose.msra.mxu0 0.0
    %925 = vmatprep.mubr.f32.mxu0 0.0
    %926 = vmatmul.mubr.f32.gmra.mrb[0].mxu0 %v859
    %v927 = vpop.f32.mrb[0].mxu0
    %v928 = vadd.f32 0.0, %v927
    %v929 = vpop.f32.mrb[0].mxu0
    %930 = vdwg.mxu0
    %v931 = vsel %vm166, %v928, -1e+30
    %v932 = vsel %vm193, %v931, -inf
    %933 = vmax.xlane.f32.xlu0 %v932
    %v934 = vpop.xlane.xlu0 %933
    %v935 = vsub.f32 %v931, %v934
    %v936 = vmul.f32 %v935, 1.442695
    %v937 = vpow.pop %v936
    %v938 = vsel %vm193, %v937, 0.0
    %939 = vadd.xlane.f32.xlu0 %v938
    %v940 = vpop.xlane.xlu0 %939
    %v942 = vsel %vm193, %v937, 0
    %944 = vmatprep.subr.mxu0 0.0
    %945 = vmatpush1.msra.mxu0 %v781
    %946 = vmatprep.subr.mxu0 0.0
    %947 = vmatpush1.msra.mxu0 0.0
    %948 = vmatprep.subr.mxu0 0.0
    %949 = vmatpush1.msra.mxu0 0.0
    %950 = vmatprep.subr.mxu0 0.0
    %951 = vmatpush1.msra.mxu0 0.0
    %952 = vmatprep.subr.mxu0 0.0
    %953 = vmatpush1.msra.mxu0 0.0
    %954 = vmatprep.subr.mxu0 0.0
    %955 = vmatpush1.msra.mxu0 0.0
    %956 = vmatprep.subr.mxu0 0.0
    %957 = vmatpush1.msra.mxu0 0.0
    %958 = vmatprep.subr.mxu0 0.0
    %959 = vmatpush1.msra.mxu0 0.0
    %960 = vmatprep.subr.mxu0 0.0
    %961 = vmatpush1.msra.mxu0 0.0
    %962 = vmatprep.subr.mxu0 0.0
    %963 = vmatpush1.msra.mxu0 0.0
    %964 = vmatprep.subr.mxu0 0.0
    %965 = vmatpush1.msra.mxu0 0.0
    %966 = vmatprep.subr.mxu0 0.0
    %967 = vmatpush1.msra.mxu0 0.0
    %968 = vmatprep.subr.mxu0 0.0
    %969 = vmatpush1.msra.mxu0 0.0
    %970 = vmatprep.subr.mxu0 0.0
    %971 = vmatpush1.msra.mxu0 0.0
    %972 = vmatprep.subr.mxu0 0.0
    %973 = vmatpush1.msra.mxu0 0.0
    %974 = vmatprep.subr.mxu0 0.0
    %975 = vmatpush1.msra.mxu0 0.0
    %976 = vmatprep.subr.mxu0 0.0
    %977 = vmatpush1.msra.mxu0 0.0
    %978 = vmatprep.subr.mxu0 0.0
    %979 = vmatpush1.msra.mxu0 0.0
    %980 = vmatprep.subr.mxu0 0.0
    %981 = vmatpush1.msra.mxu0 0.0
    %982 = vmatprep.subr.mxu0 0.0
    %983 = vmatpush1.msra.mxu0 0.0
    %984 = vmatprep.subr.mxu0 0.0
    %985 = vmatpush1.msra.mxu0 0.0
    %986 = vmatprep.subr.mxu0 0.0
    %987 = vmatpush1.msra.mxu0 0.0
    %988 = vmatprep.subr.mxu0 0.0
    %989 = vmatpush1.msra.mxu0 0.0
    %990 = vmatprep.subr.mxu0 0.0
    %991 = vmatpush1.msra.mxu0 0.0
    %992 = vmatprep.subr.mxu0 0.0
    %993 = vmatpush1.msra.mxu0 0.0
    %994 = vmatprep.subr.mxu0 0.0
    %995 = vmatpush1.msra.mxu0 0.0
    %996 = vmatprep.subr.mxu0 0.0
    %997 = vmatpush1.msra.mxu0 0.0
    %998 = vmatprep.subr.mxu0 0.0
    %999 = vmatpush1.msra.mxu0 0.0
    %1000 = vmatprep.subr.mxu0 0.0
    %1001 = vmatpush1.msra.mxu0 0.0
    %1002 = vmatprep.subr.mxu0 0.0
    %1003 = vmatpush1.msra.mxu0 0.0
    %1004 = vmatprep.subr.mxu0 0.0
    %1005 = vmatpush1.msra.mxu0 0.0
    %1006 = vmatprep.subr.mxu0 0.0
    %1007 = vmatpush1.msra.mxu0 0.0
    %1008 = vmatprep.mubr.f32.mxu0 0.0
    %1009 = vmatmul.mubr.f32.gmra.mrb[0].mxu0 %v942
    %v1010 = vpop.f32.mrb[0].mxu0
    %v1011 = vadd.f32 0.0, %v1010
    %v1012 = vpop.f32.mrb[0].mxu0
    %1013 = vdwg.mxu0
    %v1014 = vrcp.pop %v940
    %v1015 = vmul.f32 %v1011, %v1014
    %1017 = vrot.lane.b32.xlu0 %v693, 16
    %v1018 = vpop.permute.xlu0 %1017
    %1021 = vrot.lane.b32.xlu0 %v857, 32
    %v1022 = vpop.permute.xlu0 %1021
    %1025 = vrot.lane.b32.xlu0 %v1015, 48
    %v1026 = vpop.permute.xlu0 %1025
    %v1028 = vsel %vm370, %v535, %v1018
    %v1029 = vsel %vm38, %v1028, %v1022
    %vm1030 = vcmask 392192
    %v1031 = vsel %vm1030, %v1029, %v1026
    %v1032 = vld [vmem:[%s2] sm:$0xff]
    %v1033 = vld [vmem:[%s2 + $0x8] sm:$0xff]
    %v1034 = vld [vmem:[%s2 + $0x10] sm:$0xff]
    %v1035 = vld [vmem:[%s2 + $0x18] sm:$0xff]
    %vm1036 = vcmask 523264
    %v1038 = vsel %vm1036, %v1031, 0
    %v1041 = vsel %vm1036, %v1032, 0
    %v1044 = vsel %vm1036, %v1033, 0
    %v1047 = vsel %vm1036, %v1034, 0
    %v1050 = vsel %vm1036, %v1035, 0
    %1052 = vmatprep.subr.mxu0 0.0
    %1053 = vmatpush1.xpose.msra.mxu0 %v1041
    %1054 = vmatprep.subr.mxu0 0.0
    %1055 = vmatpush1.xpose.msra.mxu0 %v1044
    %1056 = vmatprep.subr.mxu0 0.0
    %1057 = vmatpush1.xpose.msra.mxu0 %v1047
    %1058 = vmatprep.subr.mxu0 0.0
    %1059 = vmatpush1.xpose.msra.mxu0 %v1050
    %1060 = vmatprep.subr.mxu0 0.0
    %1061 = vmatpush1.xpose.msra.mxu0 0.0
    %1062 = vmatprep.subr.mxu0 0.0
    %1063 = vmatpush1.xpose.msra.mxu0 0.0
    %1064 = vmatprep.subr.mxu0 0.0
    %1065 = vmatpush1.xpose.msra.mxu0 0.0
    %1066 = vmatprep.subr.mxu0 0.0
    %1067 = vmatpush1.xpose.msra.mxu0 0.0
    %1068 = vmatprep.subr.mxu0 0.0
    %1069 = vmatpush1.xpose.msra.mxu0 0.0
    %1070 = vmatprep.subr.mxu0 0.0
    %1071 = vmatpush1.xpose.msra.mxu0 0.0
    %1072 = vmatprep.subr.mxu0 0.0
    %1073 = vmatpush1.xpose.msra.mxu0 0.0
    %1074 = vmatprep.subr.mxu0 0.0
    %1075 = vmatpush1.xpose.msra.mxu0 0.0
    %1076 = vmatprep.subr.mxu0 0.0
    %1077 = vmatpush1.xpose.msra.mxu0 0.0
    %1078 = vmatprep.subr.mxu0 0.0
    %1079 = vmatpush1.xpose.msra.mxu0 0.0
    %1080 = vmatprep.subr.mxu0 0.0
    %1081 = vmatpush1.xpose.msra.mxu0 0.0
    %1082 = vmatprep.subr.mxu0 0.0
    %1083 = vmatpush1.xpose.msra.mxu0 0.0
    %1084 = vmatprep.subr.mxu0 0.0
    %1085 = vmatpush1.xpose.msra.mxu0 0.0
    %1086 = vmatprep.subr.mxu0 0.0
    %1087 = vmatpush1.xpose.msra.mxu0 0.0
    %1088 = vmatprep.subr.mxu0 0.0
    %1089 = vmatpush1.xpose.msra.mxu0 0.0
    %1090 = vmatprep.subr.mxu0 0.0
    %1091 = vmatpush1.xpose.msra.mxu0 0.0
    %1092 = vmatprep.subr.mxu0 0.0
    %1093 = vmatpush1.xpose.msra.mxu0 0.0
    %1094 = vmatprep.subr.mxu0 0.0
    %1095 = vmatpush1.xpose.msra.mxu0 0.0
    %1096 = vmatprep.subr.mxu0 0.0
    %1097 = vmatpush1.xpose.msra.mxu0 0.0
    %1098 = vmatprep.subr.mxu0 0.0
    %1099 = vmatpush1.xpose.msra.mxu0 0.0
    %1100 = vmatprep.subr.mxu0 0.0
    %1101 = vmatpush1.xpose.msra.mxu0 0.0
    %1102 = vmatprep.subr.mxu0 0.0
    %1103 = vmatpush1.xpose.msra.mxu0 0.0
    %1104 = vmatprep.subr.mxu0 0.0
    %1105 = vmatpush1.xpose.msra.mxu0 0.0
    %1106 = vmatprep.subr.mxu0 0.0
    %1107 = vmatpush1.xpose.msra.mxu0 0.0
    %1108 = vmatprep.subr.mxu0 0.0
    %1109 = vmatpush1.xpose.msra.mxu0 0.0
    %1110 = vmatprep.subr.mxu0 0.0
    %1111 = vmatpush1.xpose.msra.mxu0 0.0
    %1112 = vmatprep.subr.mxu0 0.0
    %1113 = vmatpush1.xpose.msra.mxu0 0.0
    %1114 = vmatprep.subr.mxu0 0.0
    %1115 = vmatpush1.xpose.msra.mxu0 0.0
    %1116 = vmatprep.mubr.f32.mxu0 0.0
    %1117 = vmatmul.mubr.f32.gmra.mrb[0].mxu0 %v1038
    %v1118 = vpop.f32.mrb[0].mxu0
    %v1119 = vadd.f32 0.0, %v1118
    %v1120 = vpop.f32.mrb[0].mxu0
    %1121 = vdwg.mxu0
    %1122 = vst.msk [vmem:[#allocation2] sm:$0xff] %vm38, %v1119
    // Predicated region
    $region22: #{tpu_custom_call.1} parent=1 // pred_check
      _
    $region23: #{tpu_custom_call.1} parent=1 // pred_check_branch
      %1124 = sbr.rel (0) target = $region25
    $region24: #{tpu_custom_call.1} parent=1 // pred_region
      %s1126 = ssub.s32 128, 128
      %1127 = vsyncadd [#allocation3], %s1126
      %s1129 = sshll.u32 [#allocation2], 4
      %s1130 = int_to_ptr.vmem [resolvable:$true] %s1129
      %1132 = dma.vmem_to_hbm [thread:$0]  %s1130, 128, %s5, [#allocation3]
    $region25: #{tpu_custom_call.1} parent=1 // pred_fallthru
      _
    // Predicated region
    $region26: #{tpu_custom_call.1} parent=1 // pred_check
      _
    $region27: #{tpu_custom_call.1} parent=1 // pred_check_branch
      %1134 = sbr.rel (0) target = $region29
    $region28: #{tpu_custom_call.1} parent=1 // pred_region
      %1135 = dma.done [#allocation3], 128
    $region29: #{tpu_custom_call.1} parent=1 // pred_fallthru
      _
    %1136 = vsyncpa [#allocation3], 1

</llo_original>
